<compile_context>
chip_gen: v7x
topology: tpu7x:2x2x1
jax: 0.10.0
libtpu: 0.0.40
codegen_flags: <defaults>
</compile_context>

<pallas_src>
import jax
import jax.numpy as jnp
from jax import lax
from jax.experimental import pallas as pl
from jax.experimental.pallas import tpu as pltpu


def _round_up(a, b):
    return (a + b - 1) // b * b


def _conv_bn_kernel(x_ref, w_ref, shift_ref, o_ref):
    # x_ref:     (3*C_in, TILE_L)   tap-stacked NCL slab (lane-dense on L)
    # w_ref:     (C_out, 3*C_in)    conv weight with the BN scale pre-folded
    # shift_ref: (C_out, 1)         folded BN shift
    # o_ref:     (C_out, TILE_L)    channels-major store -> no post-transpose
    acc = jnp.dot(w_ref[...], x_ref[...], preferred_element_type=jnp.float32)
    o_ref[...] = (acc + shift_ref[...]).astype(o_ref.dtype)


def custom_residual_block_fwd(x, conv1_w, bn1_gamma, bn1_beta, *,
                              stride=1, eps=1e-5, tile_l=4096):
    """x: (N, C_in, L) NCL.  Returns bn1(conv1(x)) as (N, 256, L_out) NCL."""
    n, c_in, l = x.shape
    c_out = conv1_w.shape[0]
    k3 = 3 * c_in
    l_out = (l + 2 - 3) // stride + 1
    m = n * l_out

    # ---- layout plumbing (wrapper only): 3 taps stacked along channels, NCL ----
    x_f = x.astype(jnp.float32)
    x_pad = jnp.pad(x_f, ((0, 0), (0, 0), (1, 1)))            # padding=1 halo on L
    taps = [
        lax.slice(x_pad, (0, 0, k),
                  (n, c_in, k + stride * (l_out - 1) + 1),
                  (1, 1, stride))
        for k in range(3)
    ]
    x_taps = jnp.concatenate(taps, axis=1)                    # (N, 3*C_in, L_out)

    # (C_out, C_in, 3) -> (C_out, 3*C_in); column index k*C_in + c <-> w[o, c, k]
    w_t = jnp.transpose(conv1_w, (0, 2, 1)).reshape(c_out, k3).astype(jnp.float32)

    # ---- BN batch statistics in plain JAX (tiny 12x12 centered covariance) ----
    mu = jnp.sum(x_taps, axis=(0, 2)) / m                     # (3*C_in,)
    xc = x_taps - mu[None, :, None]
    cov = jnp.einsum('nkl,njl->kj', xc, xc,
                     precision=lax.Precision.HIGHEST) / m     # (3*C_in, 3*C_in)
    mean = jnp.dot(w_t, mu, precision=lax.Precision.HIGHEST)  # per-out-channel mean
    var = jnp.einsum('ck,kj,cj->c', w_t, cov, w_t,
                     precision=lax.Precision.HIGHEST)         # centered variance
    inv = lax.rsqrt(var + eps)
    scale = bn1_gamma.astype(jnp.float32) * inv
    shift = (bn1_beta.astype(jnp.float32) - mean * scale).reshape(c_out, 1)
    w_scaled = w_t * scale[:, None]                           # fold BN scale into W

    # ---- tiling: lane-dense L tiles (multiples of 128) ----
    l_128 = _round_up(l_out, 128)
    tl = min(tile_l, l_128)
    # v7x has 2 TensorCores: keep >= 2 grid steps when the problem allows it.
    if n * (l_128 // tl) < 2 and l_128 >= 256:
        tl = _round_up(l_128 // 2, 128)
    l_padded = _round_up(l_out, tl)
    num_l = l_padded // tl
    if l_padded != l_out:
        # zero-padded columns just get `shift` written; sliced away below.
        x_taps = jnp.pad(x_taps, ((0, 0), (0, 0), (0, l_padded - l_out)))

    out = pl.pallas_call(
        _conv_bn_kernel,
        out_shape=jax.ShapeDtypeStruct((n, c_out, l_padded), jnp.float32),
        grid=(n, num_l),
        in_specs=[
            pl.BlockSpec((None, k3, tl), lambda b, j: (b, 0, j)),
            pl.BlockSpec((c_out, k3), lambda b, j: (0, 0)),
            pl.BlockSpec((c_out, 1), lambda b, j: (0, 0)),
        ],
        out_specs=pl.BlockSpec((None, c_out, tl), lambda b, j: (b, 0, j)),
        compiler_params=pltpu.CompilerParams(
            dimension_semantics=("parallel", "parallel"),
            # Explicit and well under v7x's 64 MiB physical VMEM; tile_l=4096
            # uses ~9 MiB double-buffered (out 4 MiB + x 0.25 MiB per buffer).
            vmem_limit_bytes=32 * 1024 * 1024,
        ),
    )(x_taps, w_scaled, shift)

    if l_padded != l_out:
        out = out[:, :, :l_out]
    return out.astype(x.dtype)


def _reference(x, conv1_w, bn1_gamma, bn1_beta, *, stride=1, eps=1e-5):
    out = lax.conv_general_dilated(
        x, conv1_w,
        window_strides=(stride,),
        padding=((1, 1),),
        dimension_numbers=("NCH", "OIH", "NCH"),
    )
    mean = jnp.mean(out, axis=(0, 2), keepdims=True)
    var = jnp.mean(jnp.square(out - mean), axis=(0, 2), keepdims=True)
    return (out - mean) * lax.rsqrt(var + eps) * bn1_gamma[None, :, None] + \
        bn1_beta[None, :, None]


if __name__ == "__main__":
    key = jax.random.PRNGKey(0)
    k_x, k_w = jax.random.split(key)

    N, IN_CH, L = 2, 4, 16
    C_OUT = 256          # conv1 always maps in_ch -> 256

    x = jax.random.normal(k_x, (N, IN_CH, L), dtype=jnp.float32)
    conv1_w = 0.1 * jax.random.normal(k_w, (C_OUT, IN_CH, 3), dtype=jnp.float32)
    bn1_gamma = jnp.ones((C_OUT,), dtype=jnp.float32)   # PyTorch BN default init
    bn1_beta = jnp.zeros((C_OUT,), dtype=jnp.float32)

    for stride in (1, 2):
        out = jax.block_until_ready(
            custom_residual_block_fwd(x, conv1_w, bn1_gamma, bn1_beta, stride=stride))
        ref = jax.block_until_ready(
            _reference(x, conv1_w, bn1_gamma, bn1_beta, stride=stride))
        assert out.shape == ref.shape, (out.shape, ref.shape)
        assert jnp.allclose(out, ref, atol=1e-4, rtol=1e-4), \
            f"stride={stride}: max abs diff {jnp.max(jnp.abs(out - ref))}"

    print("KERNEL_OK")
</pallas_src>

<mosaic_0001>
module attributes {stable_mosaic.version = 11 : i64} {
  func.func @_conv_bn_kernel(%arg0: i32, %arg1: i32, %arg2: memref<1x12x128xf32, #tpu.memory_space<vmem>>, %arg3: memref<256x12xf32, #tpu.memory_space<vmem>>, %arg4: memref<256x1xf32, #tpu.memory_space<vmem>>, %arg5: memref<1x256x128xf32, #tpu.memory_space<vmem>>) attributes {dimension_semantics = [#tpu.dimension_semantics<parallel>, #tpu.dimension_semantics<parallel>], iteration_bounds = array<i64: 2, 1>, scalar_prefetch = 0 : i64, scratch_operands = 0 : i64, tpu.core_type = #tpu.core_type<tc>, window_params = [{transform_indices = @transform_0, window_bounds = array<i64: 1, 12, 128>}, {pipeline_mode = #tpu.pipeline_mode<synchronous>, transform_indices = @transform_1, window_bounds = array<i64: 256, 12>}, {pipeline_mode = #tpu.pipeline_mode<synchronous>, transform_indices = @transform_2, window_bounds = array<i64: 256, 1>}, {transform_indices = @transform_3, window_bounds = array<i64: 1, 256, 128>}]} {
    %c0 = arith.constant 0 : index
    %c0_0 = arith.constant 0 : index
    %0 = vector.load %arg3[%c0, %c0_0] : memref<256x12xf32, #tpu.memory_space<vmem>>, vector<256x12xf32>
    %c0_1 = arith.constant 0 : index
    %c0_2 = arith.constant 0 : index
    %c0_3 = arith.constant 0 : index
    %1 = vector.load %arg2[%c0_1, %c0_2, %c0_3] : memref<1x12x128xf32, #tpu.memory_space<vmem>>, vector<1x12x128xf32>
    %2 = vector.shape_cast %1 : vector<1x12x128xf32> to vector<12x128xf32>
    %cst = arith.constant dense<0.000000e+00> : vector<256x128xf32>
    %3 = tpu.matmul %0, %2, %cst {dimension_numbers = #tpu.dot_dimension_numbers<[1], [0], [0], [1], [0, 0, 1, 1], [], []>} : vector<256x12xf32>, vector<12x128xf32>, vector<256x128xf32> -> vector<256x128xf32>
    %c0_4 = arith.constant 0 : index
    %c0_5 = arith.constant 0 : index
    %4 = vector.load %arg4[%c0_4, %c0_5] : memref<256x1xf32, #tpu.memory_space<vmem>>, vector<256x1xf32>
    %5 = vector.broadcast %4 : vector<256x1xf32> to vector<256x128xf32>
    %6 = arith.addf %3, %5 : vector<256x128xf32>
    %c0_6 = arith.constant 0 : index
    %c0_7 = arith.constant 0 : index
    %c0_8 = arith.constant 0 : index
    %7 = vector.load %arg5[%c0_6, %c0_7, %c0_8] : memref<1x256x128xf32, #tpu.memory_space<vmem>>, vector<1x256x128xf32>
    %8 = vector.shape_cast %7 : vector<1x256x128xf32> to vector<256x128xf32>
    %9 = vector.shape_cast %6 : vector<256x128xf32> to vector<1x256x128xf32>
    tpu.vector_store %arg5[%c0_6, %c0_7, %c0_8], %9 {strides = array<i32>} : memref<1x256x128xf32, #tpu.memory_space<vmem>>, vector<1x256x128xf32>,
    return
  }
  func.func @transform_0(%arg0: i32, %arg1: i32) -> (i32, i32, i32) {
    %c0_i32 = arith.constant 0 : i32
    %c0_i32_0 = arith.constant 0 : i32
    return %arg0, %c0_i32, %arg1 : i32, i32, i32
  }
  func.func @transform_1(%arg0: i32, %arg1: i32) -> (i32, i32) {
    %c0_i32 = arith.constant 0 : i32
    %c0_i32_0 = arith.constant 0 : i32
    %c0_i32_1 = arith.constant 0 : i32
    return %c0_i32, %c0_i32_0 : i32, i32
  }
  func.func @transform_2(%arg0: i32, %arg1: i32) -> (i32, i32) {
    %c0_i32 = arith.constant 0 : i32
    %c0_i32_0 = arith.constant 0 : i32
    %c0_i32_1 = arith.constant 0 : i32
    return %c0_i32, %c0_i32_0 : i32, i32
  }
  func.func @transform_3(%arg0: i32, %arg1: i32) -> (i32, i32, i32) {
    %c0_i32 = arith.constant 0 : i32
    %c0_i32_0 = arith.constant 0 : i32
    return %arg0, %c0_i32, %arg1 : i32, i32, i32
  }
}

</mosaic_0001>

<llo_original>
// kernel: tpu_custom_call.1
$region0: #{tpu_custom_call.1}
  #allocation0 [shape = 'u32[]', space=smem, size = 0x4, offset = 0x4, fixed_abs, tag = 'smem constant byte address 0x4 - core index']
  #allocation1 [shape = 'u32[144,128]{1,0:T(1,128)}', space=vmem, size = 0x12000, scoped, tag = 'internal scratch']
  %s0 = inlined_call_operand.vmem [shape: f32[2,12,128], index: 0, kind: input, shape index: {}]
  %s1 = inlined_call_operand.vmem [shape: f32[256,12], index: 1, kind: input, shape index: {}]
  %s2 = inlined_call_operand.vmem [shape: f32[256,1], index: 2, kind: input, shape index: {}]
  %s3 = inlined_call_operand.hbm [shape: f32[2,256,128], index: 3, kind: output, shape index: {}]
  %s4 = sld [smem:[#allocation0]]
  $region45: #{tpu_custom_call.1} parent=0
    _
  %s6 = ssub.s32 1, %s4
  %s7 = scalar_select 0, %s6, %s4
  $region1: #{tpu_custom_call.1} parent=0
    #allocation2 [shape = 'u8[262144]{0}', space=vmem, size = 0x40000, scoped, tag = 'output window, operand 0']
    #allocation3 [shape = 's32[2]{0}', space=sflag, size = 0x8, scoped, tag = 'scoped memory for tpu_custom_call.1']
    %8 = vsyncpa [#allocation3], 0
    %s9 = scalar_lea.sflag [#allocation3], 1
    %10 = vsyncpa %s9, 0
    loop: start=0, step=1, limit=4
    $region2: #{tpu_custom_call.1} parent=1 // loop_pre_header
      _
    $region3: #{tpu_custom_call.1} parent=1 // loop_header
      %s12 = sphi 0, %s16
      %p13 = scmp.ge.s32.totalorder %s12, 4
      %s19 = sphi 0, %s31
      %s20 = sphi 0, %s27
      %s21 = sphi 0, %s19
      %s22 = sphi 0, %s20
      %s23 = sphi 0, %s21
      %s24 = sphi 0, %s22
      %s36 = sphi 0, %s38
      %s39 = sphi 0, %s36
      %s40 = sphi 0, %s39
      %s56 = sphi 0, %s40
      %s60 = sphi 0, %s60
      %s62 = sphi 0, %s60
      %s63 = sphi 0, %s62
      %s77 = sphi 0, %s63
      %s81 = sphi 0, %s81
      %s83 = sphi 0, %s81
      %s84 = sphi 0, %s83
      %s98 = sphi 0, %s84
      %s106 = sphi 0, %s108
      %s109 = sphi 0, %s106
      %s110 = sphi 0, %s109
      %s126 = sphi 0, %s110
    $region4: #{tpu_custom_call.1} parent=1 // loop_header_branch
      %15 = sbr.rel (%p13) target = $region8
    $region5: #{tpu_custom_call.1} parent=1 // loop_body
      %s17 = ssub.s32 %s12, 1
      %s18 = ssub.s32 %s12, 2
      %s25 = sadd.s32 1, %s20
      %p26 = scmp.ge.s32.totalorder %s25, 1
      %s27 = scalar_select %p26, 0, %s25
      %s28 = sadd.s32 1, %s19
      %s29 = scalar_select %p26, %s28, %s19
      %p30 = scmp.ge.s32.totalorder %s29, 2
      %s31 = scalar_select %p30, 0, %s29
      %s32 = ssub.s32 %s19, %s31
      %s33 = ssub.s32 %s20, %s27
      %s34 = sor.u32 %s32, %s33
      %p35 = scmp.eq.s32.totalorder %s34, 0
      %s37 = sadd.s32 %s36, 1
      %s38 = scalar_select %p35, %s36, %s37
      %p41 = pneg %p35
      %p42 = scmp.eq.s32.totalorder %s12, 1
      %p43 = por %p41, %p42
      %p44 = scmp.ne.s32.totalorder %s36, %s39
      %p45 = scmp.eq.s32.totalorder %s12, 0
      %p46 = por %p44, %p45
      %p47 = scmp.ne.s32.totalorder %s36, %s39
      %p48 = scmp.eq.s32.totalorder %s17, 1
      %p49 = por %p47, %p48
      %p50 = scmp.ne.s32.totalorder %s39, %s40
      %p51 = scmp.eq.s32.totalorder %s17, 0
      %p52 = por %p50, %p51
      %p53 = scmp.ne.s32.totalorder %s39, %s40
      %p54 = scmp.eq.s32.totalorder %s18, 1
      %p55 = por %p53, %p54
      %p57 = scmp.ne.s32.totalorder %s40, %s56
      %p58 = scmp.eq.s32.totalorder %s18, 0
      %p59 = por %p57, %p58
      %s61 = sadd.s32 %s60, 1
      %p64 = scmp.eq.s32.totalorder %s12, 1
      %p65 = scmp.ne.s32.totalorder %s60, %s62
      %p66 = scmp.eq.s32.totalorder %s12, 0
      %p67 = por %p65, %p66
      %p68 = scmp.ne.s32.totalorder %s60, %s62
      %p69 = scmp.eq.s32.totalorder %s17, 1
      %p70 = por %p68, %p69
      %p71 = scmp.ne.s32.totalorder %s62, %s63
      %p72 = scmp.eq.s32.totalorder %s17, 0
      %p73 = por %p71, %p72
      %p74 = scmp.ne.s32.totalorder %s62, %s63
      %p75 = scmp.eq.s32.totalorder %s18, 1
      %p76 = por %p74, %p75
      %p78 = scmp.ne.s32.totalorder %s63, %s77
      %p79 = scmp.eq.s32.totalorder %s18, 0
      %p80 = por %p78, %p79
      %s82 = sadd.s32 %s81, 1
      %p85 = scmp.eq.s32.totalorder %s12, 1
      %p86 = scmp.ne.s32.totalorder %s81, %s83
      %p87 = scmp.eq.s32.totalorder %s12, 0
      %p88 = por %p86, %p87
      %p89 = scmp.ne.s32.totalorder %s81, %s83
      %p90 = scmp.eq.s32.totalorder %s17, 1
      %p91 = por %p89, %p90
      %p92 = scmp.ne.s32.totalorder %s83, %s84
      %p93 = scmp.eq.s32.totalorder %s17, 0
      %p94 = por %p92, %p93
      %p95 = scmp.ne.s32.totalorder %s83, %s84
      %p96 = scmp.eq.s32.totalorder %s18, 1
      %p97 = por %p95, %p96
      %p99 = scmp.ne.s32.totalorder %s84, %s98
      %p100 = scmp.eq.s32.totalorder %s18, 0
      %p101 = por %p99, %p100
      %s102 = ssub.s32 %s19, %s31
      %s103 = ssub.s32 %s20, %s27
      %s104 = sor.u32 %s102, %s103
      %p105 = scmp.eq.s32.totalorder %s104, 0
      %s107 = sadd.s32 %s106, 1
      %s108 = scalar_select %p105, %s106, %s107
      %p111 = pneg %p105
      %p112 = scmp.eq.s32.totalorder %s12, 1
      %p113 = por %p111, %p112
      %p114 = scmp.ne.s32.totalorder %s106, %s109
      %p115 = scmp.eq.s32.totalorder %s12, 0
      %p116 = por %p114, %p115
      %p117 = scmp.ne.s32.totalorder %s106, %s109
      %p118 = scmp.eq.s32.totalorder %s17, 1
      %p119 = por %p117, %p118
      %p120 = scmp.ne.s32.totalorder %s109, %s110
      %p121 = scmp.eq.s32.totalorder %s17, 0
      %p122 = por %p120, %p121
      %p123 = scmp.ne.s32.totalorder %s109, %s110
      %p124 = scmp.eq.s32.totalorder %s18, 1
      %p125 = por %p123, %p124
      %p127 = scmp.ne.s32.totalorder %s110, %s126
      %p128 = scmp.eq.s32.totalorder %s18, 0
      %p129 = por %p127, %p128
      %p130 = scmp.le.s32.totalorder 1, %s12
      %p131 = scmp.lt.s32.totalorder %s12, 3
      %p132 = pnand %p130, %p131
      %p133 = pneg %p132
      // Predicated region
      $region9: #{tpu_custom_call.1} parent=5 // pred_check
        _
      $region10: #{tpu_custom_call.1} parent=5 // pred_check_branch
        %135 = sbr.rel (%p132) target = $region12
      $region11: #{tpu_custom_call.1} parent=5 // pred_region
        %s136 = ssub.s32 %s12, 1
        // Predicated region
        $region13: #{tpu_custom_call.1} parent=11 // pred_check
          %p137 = pneg %p73
        $region14: #{tpu_custom_call.1} parent=11 // pred_check_branch
          %139 = sbr.rel (%p137) target = $region16
        $region15: #{tpu_custom_call.1} parent=11 // pred_region
          _
        $region16: #{tpu_custom_call.1} parent=11 // pred_fallthru
          _
        // Predicated region
        $region17: #{tpu_custom_call.1} parent=11 // pred_check
          %p140 = pneg %p94
        $region18: #{tpu_custom_call.1} parent=11 // pred_check_branch
          %142 = sbr.rel (%p140) target = $region20
        $region19: #{tpu_custom_call.1} parent=11 // pred_region
          _
        $region20: #{tpu_custom_call.1} parent=11 // pred_fallthru
          _
      $region12: #{tpu_custom_call.1} parent=5 // pred_fallthru
        _
      %p143 = scmp.lt.s32.totalorder %s12, 2
      // Predicated region
      $region21: #{tpu_custom_call.1} parent=5 // pred_check
        %p144 = pneg %p143
      $region22: #{tpu_custom_call.1} parent=5 // pred_check_branch
        %146 = sbr.rel (%p144) target = $region24
      $region23: #{tpu_custom_call.1} parent=5 // pred_region
        // Predicated region
        $region25: #{tpu_custom_call.1} parent=23 // pred_check
          %p147 = pneg %p46
        $region26: #{tpu_custom_call.1} parent=23 // pred_check_branch
          %149 = sbr.rel (%p147) target = $region28
        $region27: #{tpu_custom_call.1} parent=23 // pred_region
          %p150 = scmp.lt.s32.totalorder %s19, 1
          %s151 = scalar_select %p150, %s19, 1
          %p152 = scmp.lt.s32.totalorder %s20, 0
          %s153 = scalar_select %p152, %s20, 0
          %s154 = smul.addr %s151, 2
          %s155 = sadd.s32 %s153, %s154
          %s156 = smul.addr %s155, 8
          %s157 = scalar_lea.vmem %s0, %s156
        $region28: #{tpu_custom_call.1} parent=23 // pred_fallthru
          _
      $region24: #{tpu_custom_call.1} parent=5 // pred_fallthru
        _
      %p158 = scmp.le.s32.totalorder 1, %s12
      %p159 = scmp.lt.s32.totalorder %s12, 3
      %p160 = pnand %p158, %p159
      %p161 = pneg %p160
      // Predicated region
      $region29: #{tpu_custom_call.1} parent=5 // pred_check
        _
      $region30: #{tpu_custom_call.1} parent=5 // pred_check_branch
        %163 = sbr.rel (%p160) target = $region32
      $region31: #{tpu_custom_call.1} parent=5 // pred_region
        %s164 = ssub.s32 %s12, 1
        %p165 = scmp.lt.s32.totalorder %s21, 1
        %s166 = scalar_select %p165, %s21, 1
        %p167 = scmp.lt.s32.totalorder %s22, 0
        %s168 = scalar_select %p167, %s22, 0
        %s169 = smul.addr %s166, 2
        %s170 = sadd.s32 %s168, %s169
        %s171 = smul.addr %s170, 8
        %s172 = scalar_lea.vmem %s0, %s171
        %p173 = pneg %p52
        %p174 = pneg %p49
        %p175 = pneg %p73
        %p176 = pneg %p70
        %p177 = pneg %p94
        %p178 = pneg %p91
        %p179 = pneg %p122
        %p180 = pneg %p119
        %s181 = sand.u32 %s109, 1
        %s182 = scalar_lea.sflag [#allocation3], %s181
        %s183 = sand.u32 %s109, 1
        %s184 = smul.addr %s183, 256
        %s185 = scalar_lea.vmem [#allocation2], %s184
        %p186 = scmp.lt.s32.totalorder %s21, 1
        %s187 = scalar_select %p186, %s21, 1
        %p188 = scmp.lt.s32.totalorder %s22, 0
        %s189 = scalar_select %p188, %s22, 0
        %s190 = smul.addr %s187, 2
        %s191 = sadd.s32 %s189, %s190
        %s192 = smul.addr %s191, 8
        %s193 = scalar_lea.vmem %s0, %s192
        %v194 = vld [vmem:[%s1] sm:$0xff]
        %v195 = vld [vmem:[%s1 + $0x8] sm:$0xff]
        %v196 = vld [vmem:[%s1 + $0x10] sm:$0xff]
        %v197 = vld [vmem:[%s1 + $0x18] sm:$0xff]
        %v198 = vld [vmem:[%s1 + $0x20] sm:$0xff]
        %v199 = vld [vmem:[%s1 + $0x28] sm:$0xff]
        %v200 = vld [vmem:[%s1 + $0x30] sm:$0xff]
        %v201 = vld [vmem:[%s1 + $0x38] sm:$0xff]
        %v202 = vld [vmem:[%s1 + $0x40] sm:$0xff]
        %v203 = vld [vmem:[%s1 + $0x48] sm:$0xff]
        %v204 = vld [vmem:[%s1 + $0x50] sm:$0xff]
        %v205 = vld [vmem:[%s1 + $0x58] sm:$0xff]
        %v206 = vld [vmem:[%s1 + $0x60] sm:$0xff]
        %v207 = vld [vmem:[%s1 + $0x68] sm:$0xff]
        %v208 = vld [vmem:[%s1 + $0x70] sm:$0xff]
        %v209 = vld [vmem:[%s1 + $0x78] sm:$0xff]
        %v210 = vld [vmem:[%s1 + $0x80] sm:$0xff]
        %v211 = vld [vmem:[%s1 + $0x88] sm:$0xff]
        %v212 = vld [vmem:[%s1 + $0x90] sm:$0xff]
        %v213 = vld [vmem:[%s1 + $0x98] sm:$0xff]
        %v214 = vld [vmem:[%s1 + $0xa0] sm:$0xff]
        %v215 = vld [vmem:[%s1 + $0xa8] sm:$0xff]
        %v216 = vld [vmem:[%s1 + $0xb0] sm:$0xff]
        %v217 = vld [vmem:[%s1 + $0xb8] sm:$0xff]
        %v218 = vld [vmem:[%s1 + $0xc0] sm:$0xff]
        %v219 = vld [vmem:[%s1 + $0xc8] sm:$0xff]
        %v220 = vld [vmem:[%s1 + $0xd0] sm:$0xff]
        %v221 = vld [vmem:[%s1 + $0xd8] sm:$0xff]
        %v222 = vld [vmem:[%s1 + $0xe0] sm:$0xff]
        %v223 = vld [vmem:[%s1 + $0xe8] sm:$0xff]
        %v224 = vld [vmem:[%s1 + $0xf0] sm:$0xff]
        %v225 = vld [vmem:[%s1 + $0xf8] sm:$0xff]
        %v226 = vld [vmem:[%s193] sm:$0xff]
        %v227 = vld [vmem:[%s193 + $0x8] sm:$0xf]
        %v228 = vld [vmem:[%s2] sm:$0xff]
        %v229 = vld [vmem:[%s2 + $0x8] sm:$0xff]
        %v230 = vld [vmem:[%s2 + $0x10] sm:$0xff]
        %v231 = vld [vmem:[%s2 + $0x18] sm:$0xff]
        %v232 = vld [vmem:[%s2 + $0x20] sm:$0xff]
        %v233 = vld [vmem:[%s2 + $0x28] sm:$0xff]
        %v234 = vld [vmem:[%s2 + $0x30] sm:$0xff]
        %v235 = vld [vmem:[%s2 + $0x38] sm:$0xff]
        %v236 = vld [vmem:[%s2 + $0x40] sm:$0xff]
        %v237 = vld [vmem:[%s2 + $0x48] sm:$0xff]
        %v238 = vld [vmem:[%s2 + $0x50] sm:$0xff]
        %v239 = vld [vmem:[%s2 + $0x58] sm:$0xff]
        %v240 = vld [vmem:[%s2 + $0x60] sm:$0xff]
        %v241 = vld [vmem:[%s2 + $0x68] sm:$0xff]
        %v242 = vld [vmem:[%s2 + $0x70] sm:$0xff]
        %v243 = vld [vmem:[%s2 + $0x78] sm:$0xff]
        %v244 = vld [vmem:[%s2 + $0x80] sm:$0xff]
        %v245 = vld [vmem:[%s2 + $0x88] sm:$0xff]
        %v246 = vld [vmem:[%s2 + $0x90] sm:$0xff]
        %v247 = vld [vmem:[%s2 + $0x98] sm:$0xff]
        %v248 = vld [vmem:[%s2 + $0xa0] sm:$0xff]
        %v249 = vld [vmem:[%s2 + $0xa8] sm:$0xff]
        %v250 = vld [vmem:[%s2 + $0xb0] sm:$0xff]
        %v251 = vld [vmem:[%s2 + $0xb8] sm:$0xff]
        %v252 = vld [vmem:[%s2 + $0xc0] sm:$0xff]
        %v253 = vld [vmem:[%s2 + $0xc8] sm:$0xff]
        %v254 = vld [vmem:[%s2 + $0xd0] sm:$0xff]
        %v255 = vld [vmem:[%s2 + $0xd8] sm:$0xff]
        %v256 = vld [vmem:[%s2 + $0xe0] sm:$0xff]
        %v257 = vld [vmem:[%s2 + $0xe8] sm:$0xff]
        %v258 = vld [vmem:[%s2 + $0xf0] sm:$0xff]
        %v259 = vld [vmem:[%s2 + $0xf8] sm:$0xff]
        %261 = vset.pattern.permute.xlu0 0
        %262 = vperm.xlu0 %261, %v228
        %v263 = vpop.permute.xlu0 %262
        %266 = vset.pattern.permute.xlu0 0
        %267 = vperm.xlu0 %266, %v229
        %v268 = vpop.permute.xlu0 %267
        %271 = vset.pattern.permute.xlu0 0
        %272 = vperm.xlu0 %271, %v230
        %v273 = vpop.permute.xlu0 %272
        %276 = vset.pattern.permute.xlu0 0
        %277 = vperm.xlu0 %276, %v231
        %v278 = vpop.permute.xlu0 %277
        %281 = vset.pattern.permute.xlu0 0
        %282 = vperm.xlu0 %281, %v232
        %v283 = vpop.permute.xlu0 %282
        %286 = vset.pattern.permute.xlu0 0
        %287 = vperm.xlu0 %286, %v233
        %v288 = vpop.permute.xlu0 %287
        %291 = vset.pattern.permute.xlu0 0
        %292 = vperm.xlu0 %291, %v234
        %v293 = vpop.permute.xlu0 %292
        %296 = vset.pattern.permute.xlu0 0
        %297 = vperm.xlu0 %296, %v235
        %v298 = vpop.permute.xlu0 %297
        %301 = vset.pattern.permute.xlu0 0
        %302 = vperm.xlu0 %301, %v236
        %v303 = vpop.permute.xlu0 %302
        %306 = vset.pattern.permute.xlu0 0
        %307 = vperm.xlu0 %306, %v237
        %v308 = vpop.permute.xlu0 %307
        %311 = vset.pattern.permute.xlu0 0
        %312 = vperm.xlu0 %311, %v238
        %v313 = vpop.permute.xlu0 %312
        %316 = vset.pattern.permute.xlu0 0
        %317 = vperm.xlu0 %316, %v239
        %v318 = vpop.permute.xlu0 %317
        %321 = vset.pattern.permute.xlu0 0
        %322 = vperm.xlu0 %321, %v240
        %v323 = vpop.permute.xlu0 %322
        %326 = vset.pattern.permute.xlu0 0
        %327 = vperm.xlu0 %326, %v241
        %v328 = vpop.permute.xlu0 %327
        %331 = vset.pattern.permute.xlu0 0
        %332 = vperm.xlu0 %331, %v242
        %v333 = vpop.permute.xlu0 %332
        %336 = vset.pattern.permute.xlu0 0
        %337 = vperm.xlu0 %336, %v243
        %v338 = vpop.permute.xlu0 %337
        %341 = vset.pattern.permute.xlu0 0
        %342 = vperm.xlu0 %341, %v244
        %v343 = vpop.permute.xlu0 %342
        %346 = vset.pattern.permute.xlu0 0
        %347 = vperm.xlu0 %346, %v245
        %v348 = vpop.permute.xlu0 %347
        %351 = vset.pattern.permute.xlu0 0
        %352 = vperm.xlu0 %351, %v246
        %v353 = vpop.permute.xlu0 %352
        %356 = vset.pattern.permute.xlu0 0
        %357 = vperm.xlu0 %356, %v247
        %v358 = vpop.permute.xlu0 %357
        %361 = vset.pattern.permute.xlu0 0
        %362 = vperm.xlu0 %361, %v248
        %v363 = vpop.permute.xlu0 %362
        %366 = vset.pattern.permute.xlu0 0
        %367 = vperm.xlu0 %366, %v249
        %v368 = vpop.permute.xlu0 %367
        %371 = vset.pattern.permute.xlu0 0
        %372 = vperm.xlu0 %371, %v250
        %v373 = vpop.permute.xlu0 %372
        %376 = vset.pattern.permute.xlu0 0
        %377 = vperm.xlu0 %376, %v251
        %v378 = vpop.permute.xlu0 %377
        %381 = vset.pattern.permute.xlu0 0
        %382 = vperm.xlu0 %381, %v252
        %v383 = vpop.permute.xlu0 %382
        %386 = vset.pattern.permute.xlu0 0
        %387 = vperm.xlu0 %386, %v253
        %v388 = vpop.permute.xlu0 %387
        %391 = vset.pattern.permute.xlu0 0
        %392 = vperm.xlu0 %391, %v254
        %v393 = vpop.permute.xlu0 %392
        %396 = vset.pattern.permute.xlu0 0
        %397 = vperm.xlu0 %396, %v255
        %v398 = vpop.permute.xlu0 %397
        %401 = vset.pattern.permute.xlu0 0
        %402 = vperm.xlu0 %401, %v256
        %v403 = vpop.permute.xlu0 %402
        %406 = vset.pattern.permute.xlu0 0
        %407 = vperm.xlu0 %406, %v257
        %v408 = vpop.permute.xlu0 %407
        %411 = vset.pattern.permute.xlu0 0
        %412 = vperm.xlu0 %411, %v258
        %v413 = vpop.permute.xlu0 %412
        %416 = vset.pattern.permute.xlu0 0
        %417 = vperm.xlu0 %416, %v259
        %v418 = vpop.permute.xlu0 %417
        %vm420 = vcmask 97280
        %v422 = vsel %vm420, %v194, 0
        %v425 = vsel %vm420, %v195, 0
        %v428 = vsel %vm420, %v196, 0
        %v431 = vsel %vm420, %v197, 0
        %v434 = vsel %vm420, %v198, 0
        %v437 = vsel %vm420, %v199, 0
        %v440 = vsel %vm420, %v200, 0
        %v443 = vsel %vm420, %v201, 0
        %v446 = vsel %vm420, %v202, 0
        %v449 = vsel %vm420, %v203, 0
        %v452 = vsel %vm420, %v204, 0
        %v455 = vsel %vm420, %v205, 0
        %v458 = vsel %vm420, %v206, 0
        %v461 = vsel %vm420, %v207, 0
        %v464 = vsel %vm420, %v208, 0
        %v467 = vsel %vm420, %v209, 0
        %v470 = vsel %vm420, %v210, 0
        %v473 = vsel %vm420, %v211, 0
        %v476 = vsel %vm420, %v212, 0
        %v479 = vsel %vm420, %v213, 0
        %v482 = vsel %vm420, %v214, 0
        %v485 = vsel %vm420, %v215, 0
        %v488 = vsel %vm420, %v216, 0
        %v491 = vsel %vm420, %v217, 0
        %v494 = vsel %vm420, %v218, 0
        %v497 = vsel %vm420, %v219, 0
        %v500 = vsel %vm420, %v220, 0
        %v503 = vsel %vm420, %v221, 0
        %v506 = vsel %vm420, %v222, 0
        %v509 = vsel %vm420, %v223, 0
        %v512 = vsel %vm420, %v224, 0
        %v515 = vsel %vm420, %v225, 0
        %vm517 = vcmask 1043456
        %v519 = vsel %vm517, %v227, 0
        %521 = vmatprep.subr.mxu0 0.0
        %522 = vmatpush1.msra.mxu0 %v226
        %523 = vmatprep.subr.mxu0 0.0
        %524 = vmatpush1.msra.mxu0 %v519
        %525 = vmatprep.subr.mxu0 0.0
        %526 = vmatpush1.msra.mxu0 0.0
        %527 = vmatprep.subr.mxu0 0.0
        %528 = vmatpush1.msra.mxu0 0.0
        %529 = vmatprep.subr.mxu0 0.0
        %530 = vmatpush1.msra.mxu0 0.0
        %531 = vmatprep.subr.mxu0 0.0
        %532 = vmatpush1.msra.mxu0 0.0
        %533 = vmatprep.subr.mxu0 0.0
        %534 = vmatpush1.msra.mxu0 0.0
        %535 = vmatprep.subr.mxu0 0.0
        %536 = vmatpush1.msra.mxu0 0.0
        %537 = vmatprep.subr.mxu0 0.0
        %538 = vmatpush1.msra.mxu0 0.0
        %539 = vmatprep.subr.mxu0 0.0
        %540 = vmatpush1.msra.mxu0 0.0
        %541 = vmatprep.subr.mxu0 0.0
        %542 = vmatpush1.msra.mxu0 0.0
        %543 = vmatprep.subr.mxu0 0.0
        %544 = vmatpush1.msra.mxu0 0.0
        %545 = vmatprep.subr.mxu0 0.0
        %546 = vmatpush1.msra.mxu0 0.0
        %547 = vmatprep.subr.mxu0 0.0
        %548 = vmatpush1.msra.mxu0 0.0
        %549 = vmatprep.subr.mxu0 0.0
        %550 = vmatpush1.msra.mxu0 0.0
        %551 = vmatprep.subr.mxu0 0.0
        %552 = vmatpush1.msra.mxu0 0.0
        %553 = vmatprep.subr.mxu0 0.0
        %554 = vmatpush1.msra.mxu0 0.0
        %555 = vmatprep.subr.mxu0 0.0
        %556 = vmatpush1.msra.mxu0 0.0
        %557 = vmatprep.subr.mxu0 0.0
        %558 = vmatpush1.msra.mxu0 0.0
        %559 = vmatprep.subr.mxu0 0.0
        %560 = vmatpush1.msra.mxu0 0.0
        %561 = vmatprep.subr.mxu0 0.0
        %562 = vmatpush1.msra.mxu0 0.0
        %563 = vmatprep.subr.mxu0 0.0
        %564 = vmatpush1.msra.mxu0 0.0
        %565 = vmatprep.subr.mxu0 0.0
        %566 = vmatpush1.msra.mxu0 0.0
        %567 = vmatprep.subr.mxu0 0.0
        %568 = vmatpush1.msra.mxu0 0.0
        %569 = vmatprep.subr.mxu0 0.0
        %570 = vmatpush1.msra.mxu0 0.0
        %571 = vmatprep.subr.mxu0 0.0
        %572 = vmatpush1.msra.mxu0 0.0
        %573 = vmatprep.subr.mxu0 0.0
        %574 = vmatpush1.msra.mxu0 0.0
        %575 = vmatprep.subr.mxu0 0.0
        %576 = vmatpush1.msra.mxu0 0.0
        %577 = vmatprep.subr.mxu0 0.0
        %578 = vmatpush1.msra.mxu0 0.0
        %579 = vmatprep.subr.mxu0 0.0
        %580 = vmatpush1.msra.mxu0 0.0
        %581 = vmatprep.subr.mxu0 0.0
        %582 = vmatpush1.msra.mxu0 0.0
        %583 = vmatprep.subr.mxu0 0.0
        %584 = vmatpush1.msra.mxu0 0.0
        %585 = vmatprep.mubr.f32.mxu0 0.0
        %586 = vmatmul.mubr.f32.gmra.mrb[0].mxu0 %v422
        %v587 = vpop.f32.mrb[0].mxu0
        %v588 = vadd.f32 %v263, %v587
        %v589 = vpop.f32.mrb[0].mxu0
        %590 = vmatprep.mubr.f32.mxu0 0.0
        %591 = vmatmul.mubr.f32.gmra.mrb[0].mxu0 %v425
        %v592 = vpop.f32.mrb[0].mxu0
        %v593 = vadd.f32 %v268, %v592
        %v594 = vpop.f32.mrb[0].mxu0
        %595 = vmatprep.mubr.f32.mxu0 0.0
        %596 = vmatmul.mubr.f32.gmra.mrb[0].mxu0 %v428
        %v597 = vpop.f32.mrb[0].mxu0
        %v598 = vadd.f32 %v273, %v597
        %v599 = vpop.f32.mrb[0].mxu0
        %600 = vmatprep.mubr.f32.mxu0 0.0
        %601 = vmatmul.mubr.f32.gmra.mrb[0].mxu0 %v431
        %v602 = vpop.f32.mrb[0].mxu0
        %v603 = vadd.f32 %v278, %v602
        %v604 = vpop.f32.mrb[0].mxu0
        %605 = vmatprep.mubr.f32.mxu0 0.0
        %606 = vmatmul.mubr.f32.gmra.mrb[0].mxu0 %v434
        %v607 = vpop.f32.mrb[0].mxu0
        %v608 = vadd.f32 %v283, %v607
        %v609 = vpop.f32.mrb[0].mxu0
        %610 = vmatprep.mubr.f32.mxu0 0.0
        %611 = vmatmul.mubr.f32.gmra.mrb[0].mxu0 %v437
        %v612 = vpop.f32.mrb[0].mxu0
        %v613 = vadd.f32 %v288, %v612
        %v614 = vpop.f32.mrb[0].mxu0
        %615 = vmatprep.mubr.f32.mxu0 0.0
        %616 = vmatmul.mubr.f32.gmra.mrb[0].mxu0 %v440
        %v617 = vpop.f32.mrb[0].mxu0
        %v618 = vadd.f32 %v293, %v617
        %v619 = vpop.f32.mrb[0].mxu0
        %620 = vmatprep.mubr.f32.mxu0 0.0
        %621 = vmatmul.mubr.f32.gmra.mrb[0].mxu0 %v443
        %v622 = vpop.f32.mrb[0].mxu0
        %v623 = vadd.f32 %v298, %v622
        %v624 = vpop.f32.mrb[0].mxu0
        %625 = vmatprep.mubr.f32.mxu0 0.0
        %626 = vmatmul.mubr.f32.gmra.mrb[0].mxu0 %v446
        %v627 = vpop.f32.mrb[0].mxu0
        %v628 = vadd.f32 %v303, %v627
        %v629 = vpop.f32.mrb[0].mxu0
        %630 = vmatprep.mubr.f32.mxu0 0.0
        %631 = vmatmul.mubr.f32.gmra.mrb[0].mxu0 %v449
        %v632 = vpop.f32.mrb[0].mxu0
        %v633 = vadd.f32 %v308, %v632
        %v634 = vpop.f32.mrb[0].mxu0
        %635 = vmatprep.mubr.f32.mxu0 0.0
        %636 = vmatmul.mubr.f32.gmra.mrb[0].mxu0 %v452
        %v637 = vpop.f32.mrb[0].mxu0
        %v638 = vadd.f32 %v313, %v637
        %v639 = vpop.f32.mrb[0].mxu0
        %640 = vmatprep.mubr.f32.mxu0 0.0
        %641 = vmatmul.mubr.f32.gmra.mrb[0].mxu0 %v455
        %v642 = vpop.f32.mrb[0].mxu0
        %v643 = vadd.f32 %v318, %v642
        %v644 = vpop.f32.mrb[0].mxu0
        %645 = vmatprep.mubr.f32.mxu0 0.0
        %646 = vmatmul.mubr.f32.gmra.mrb[0].mxu0 %v458
        %v647 = vpop.f32.mrb[0].mxu0
        %v648 = vadd.f32 %v323, %v647
        %v649 = vpop.f32.mrb[0].mxu0
        %650 = vmatprep.mubr.f32.mxu0 0.0
        %651 = vmatmul.mubr.f32.gmra.mrb[0].mxu0 %v461
        %v652 = vpop.f32.mrb[0].mxu0
        %v653 = vadd.f32 %v328, %v652
        %v654 = vpop.f32.mrb[0].mxu0
        %655 = vmatprep.mubr.f32.mxu0 0.0
        %656 = vmatmul.mubr.f32.gmra.mrb[0].mxu0 %v464
        %v657 = vpop.f32.mrb[0].mxu0
        %v658 = vadd.f32 %v333, %v657
        %v659 = vpop.f32.mrb[0].mxu0
        %660 = vmatprep.mubr.f32.mxu0 0.0
        %661 = vmatmul.mubr.f32.gmra.mrb[0].mxu0 %v467
        %v662 = vpop.f32.mrb[0].mxu0
        %v663 = vadd.f32 %v338, %v662
        %v664 = vpop.f32.mrb[0].mxu0
        %665 = vmatprep.mubr.f32.mxu0 0.0
        %666 = vmatmul.mubr.f32.gmra.mrb[0].mxu0 %v470
        %v667 = vpop.f32.mrb[0].mxu0
        %v668 = vadd.f32 %v343, %v667
        %v669 = vpop.f32.mrb[0].mxu0
        %670 = vmatprep.mubr.f32.mxu0 0.0
        %671 = vmatmul.mubr.f32.gmra.mrb[0].mxu0 %v473
        %v672 = vpop.f32.mrb[0].mxu0
        %v673 = vadd.f32 %v348, %v672
        %v674 = vpop.f32.mrb[0].mxu0
        %675 = vmatprep.mubr.f32.mxu0 0.0
        %676 = vmatmul.mubr.f32.gmra.mrb[0].mxu0 %v476
        %v677 = vpop.f32.mrb[0].mxu0
        %v678 = vadd.f32 %v353, %v677
        %v679 = vpop.f32.mrb[0].mxu0
        %680 = vmatprep.mubr.f32.mxu0 0.0
        %681 = vmatmul.mubr.f32.gmra.mrb[0].mxu0 %v479
        %v682 = vpop.f32.mrb[0].mxu0
        %v683 = vadd.f32 %v358, %v682
        %v684 = vpop.f32.mrb[0].mxu0
        %685 = vmatprep.mubr.f32.mxu0 0.0
        %686 = vmatmul.mubr.f32.gmra.mrb[0].mxu0 %v482
        %v687 = vpop.f32.mrb[0].mxu0
        %v688 = vadd.f32 %v363, %v687
        %v689 = vpop.f32.mrb[0].mxu0
        %690 = vmatprep.mubr.f32.mxu0 0.0
        %691 = vmatmul.mubr.f32.gmra.mrb[0].mxu0 %v485
        %v692 = vpop.f32.mrb[0].mxu0
        %v693 = vadd.f32 %v368, %v692
        %v694 = vpop.f32.mrb[0].mxu0
        %695 = vmatprep.mubr.f32.mxu0 0.0
        %696 = vmatmul.mubr.f32.gmra.mrb[0].mxu0 %v488
        %v697 = vpop.f32.mrb[0].mxu0
        %v698 = vadd.f32 %v373, %v697
        %v699 = vpop.f32.mrb[0].mxu0
        %700 = vmatprep.mubr.f32.mxu0 0.0
        %701 = vmatmul.mubr.f32.gmra.mrb[0].mxu0 %v491
        %v702 = vpop.f32.mrb[0].mxu0
        %v703 = vadd.f32 %v378, %v702
        %v704 = vpop.f32.mrb[0].mxu0
        %705 = vmatprep.mubr.f32.mxu0 0.0
        %706 = vmatmul.mubr.f32.gmra.mrb[0].mxu0 %v494
        %v707 = vpop.f32.mrb[0].mxu0
        %v708 = vadd.f32 %v383, %v707
        %v709 = vpop.f32.mrb[0].mxu0
        %710 = vmatprep.mubr.f32.mxu0 0.0
        %711 = vmatmul.mubr.f32.gmra.mrb[0].mxu0 %v497
        %v712 = vpop.f32.mrb[0].mxu0
        %v713 = vadd.f32 %v388, %v712
        %v714 = vpop.f32.mrb[0].mxu0
        %715 = vmatprep.mubr.f32.mxu0 0.0
        %716 = vmatmul.mubr.f32.gmra.mrb[0].mxu0 %v500
        %v717 = vpop.f32.mrb[0].mxu0
        %v718 = vadd.f32 %v393, %v717
        %v719 = vpop.f32.mrb[0].mxu0
        %720 = vmatprep.mubr.f32.mxu0 0.0
        %721 = vmatmul.mubr.f32.gmra.mrb[0].mxu0 %v503
        %v722 = vpop.f32.mrb[0].mxu0
        %v723 = vadd.f32 %v398, %v722
        %v724 = vpop.f32.mrb[0].mxu0
        %725 = vmatprep.mubr.f32.mxu0 0.0
        %726 = vmatmul.mubr.f32.gmra.mrb[0].mxu0 %v506
        %v727 = vpop.f32.mrb[0].mxu0
        %v728 = vadd.f32 %v403, %v727
        %v729 = vpop.f32.mrb[0].mxu0
        %730 = vmatprep.mubr.f32.mxu0 0.0
        %731 = vmatmul.mubr.f32.gmra.mrb[0].mxu0 %v509
        %v732 = vpop.f32.mrb[0].mxu0
        %v733 = vadd.f32 %v408, %v732
        %v734 = vpop.f32.mrb[0].mxu0
        %735 = vmatprep.mubr.f32.mxu0 0.0
        %736 = vmatmul.mubr.f32.gmra.mrb[0].mxu0 %v512
        %v737 = vpop.f32.mrb[0].mxu0
        %v738 = vadd.f32 %v413, %v737
        %v739 = vpop.f32.mrb[0].mxu0
        %740 = vmatprep.mubr.f32.mxu0 0.0
        %741 = vmatmul.mubr.f32.gmra.mrb[0].mxu0 %v515
        %v742 = vpop.f32.mrb[0].mxu0
        %v743 = vadd.f32 %v418, %v742
        %v744 = vpop.f32.mrb[0].mxu0
        %745 = vdwg.mxu0
        %746 = vst [vmem:[%s185] sm:$0xff] %v588
        %747 = vst [vmem:[%s185 + $0x8] sm:$0xff] %v593
        %748 = vst [vmem:[%s185 + $0x10] sm:$0xff] %v598
        %749 = vst [vmem:[%s185 + $0x18] sm:$0xff] %v603
        %750 = vst [vmem:[%s185 + $0x20] sm:$0xff] %v608
        %751 = vst [vmem:[%s185 + $0x28] sm:$0xff] %v613
        %752 = vst [vmem:[%s185 + $0x30] sm:$0xff] %v618
        %753 = vst [vmem:[%s185 + $0x38] sm:$0xff] %v623
        %754 = vst [vmem:[%s185 + $0x40] sm:$0xff] %v628
        %755 = vst [vmem:[%s185 + $0x48] sm:$0xff] %v633
        %756 = vst [vmem:[%s185 + $0x50] sm:$0xff] %v638
        %757 = vst [vmem:[%s185 + $0x58] sm:$0xff] %v643
        %758 = vst [vmem:[%s185 + $0x60] sm:$0xff] %v648
        %759 = vst [vmem:[%s185 + $0x68] sm:$0xff] %v653
        %760 = vst [vmem:[%s185 + $0x70] sm:$0xff] %v658
        %761 = vst [vmem:[%s185 + $0x78] sm:$0xff] %v663
        %762 = vst [vmem:[%s185 + $0x80] sm:$0xff] %v668
        %763 = vst [vmem:[%s185 + $0x88] sm:$0xff] %v673
        %764 = vst [vmem:[%s185 + $0x90] sm:$0xff] %v678
        %765 = vst [vmem:[%s185 + $0x98] sm:$0xff] %v683
        %766 = vst [vmem:[%s185 + $0xa0] sm:$0xff] %v688
        %767 = vst [vmem:[%s185 + $0xa8] sm:$0xff] %v693
        %768 = vst [vmem:[%s185 + $0xb0] sm:$0xff] %v698
        %769 = vst [vmem:[%s185 + $0xb8] sm:$0xff] %v703
        %770 = vst [vmem:[%s185 + $0xc0] sm:$0xff] %v708
        %771 = vst [vmem:[%s185 + $0xc8] sm:$0xff] %v713
        %772 = vst [vmem:[%s185 + $0xd0] sm:$0xff] %v718
        %773 = vst [vmem:[%s185 + $0xd8] sm:$0xff] %v723
        %774 = vst [vmem:[%s185 + $0xe0] sm:$0xff] %v728
        %775 = vst [vmem:[%s185 + $0xe8] sm:$0xff] %v733
        %776 = vst [vmem:[%s185 + $0xf0] sm:$0xff] %v738
        %777 = vst [vmem:[%s185 + $0xf8] sm:$0xff] %v743
        %s778 = sand.u32 %s109, 1
        %s779 = scalar_lea.sflag [#allocation3], %s778
        %s780 = sand.u32 %s109, 1
        %s781 = smul.addr %s780, 256
        %s782 = scalar_lea.vmem [#allocation2], %s781
        // Predicated region
        $region33: #{tpu_custom_call.1} parent=31 // pred_check
          %p783 = pneg %p119
        $region34: #{tpu_custom_call.1} parent=31 // pred_check_branch
          %785 = sbr.rel (%p783) target = $region36
        $region35: #{tpu_custom_call.1} parent=31 // pred_region
          %s787 = ssub.s32 4096, 4096
          %788 = vsyncadd %s779, %s787
          %s789 = smul.addr %s21, 32
          %s790 = sadd.s32 %s22, %s789
          %s791 = smul.addr %s790, 128
          %s792 = scalar_lea.hbm %s3, %s791
          %s793 = sshll.u32 %s782, 4
          %s794 = int_to_ptr.vmem [resolvable:$true] %s793
          %799 = dma.vmem_to_hbm [thread:$0]  %s794, 4096, %s792, %s779, 128, 128, 8
        $region36: #{tpu_custom_call.1} parent=31 // pred_fallthru
          _
      $region32: #{tpu_custom_call.1} parent=5 // pred_fallthru
        _
      %p800 = scmp.le.s32.totalorder 2, %s12
      // Predicated region
      $region37: #{tpu_custom_call.1} parent=5 // pred_check
        %p801 = pneg %p800
      $region38: #{tpu_custom_call.1} parent=5 // pred_check_branch
        %803 = sbr.rel (%p801) target = $region40
      $region39: #{tpu_custom_call.1} parent=5 // pred_region
        %s804 = ssub.s32 %s12, 2
        // Predicated region
        $region41: #{tpu_custom_call.1} parent=39 // pred_check
          %p805 = pneg %p125
        $region42: #{tpu_custom_call.1} parent=39 // pred_check_branch
          %807 = sbr.rel (%p805) target = $region44
        $region43: #{tpu_custom_call.1} parent=39 // pred_region
          %s808 = sand.u32 %s110, 1
          %s809 = scalar_lea.sflag [#allocation3], %s808
          %s810 = sand.u32 %s110, 1
          %s811 = smul.addr %s810, 256
          %s812 = scalar_lea.vmem [#allocation2], %s811
          %813 = dma.done %s809, 4096
        $region44: #{tpu_custom_call.1} parent=39 // pred_fallthru
          _
      $region40: #{tpu_custom_call.1} parent=5 // pred_fallthru
        _
    $region6: #{tpu_custom_call.1} parent=1 // loop_footer
      %s16 = sadd.s32 1, %s12
    $region7: #{tpu_custom_call.1} parent=1 // loop_footer_branch
      %11 = sbr.rel target = $region3
    $region8: #{tpu_custom_call.1} parent=1 // loop_exit
      _
    %814 = vsyncpa [#allocation3], 1
    %s815 = scalar_lea.sflag [#allocation3], 1
    %816 = vsyncpa %s815, 1

</llo_original>
